<compile_context>
chip_gen: v6e
topology: v6e:2x2x1
jax: 0.10.0
libtpu: 0.0.40
codegen_flags: <defaults>
</compile_context>

<pallas_src>
import functools
import math

import jax
import jax.numpy as jnp
from jax.experimental import pallas as pl
from jax.experimental.pallas import tpu as pltpu


_VMEM_LIMIT_BYTES = 32 * 1024 * 1024      # scoped-VMEM budget (safe on v5e/v6e/v7x)
_APPLY_BLOCK_BYTES = 4 * 1024 * 1024      # per-x-tile budget for the fallback apply
_FUSED_BUDGET_BYTES = 20 * 1024 * 1024    # per-sample footprint allowed for fused path


def _full_spec(arr):
    nd = arr.ndim
    return pl.BlockSpec(arr.shape, lambda *_: (0,) * nd)


# ---------------------------------------------------------------------------
# Shared gate math (operates on values already resident in VMEM).
#   x:      (C, H*W)   input dtype (bf16 stays bf16 on the MXU)
#   pcat:   (H*W, H+W) 0/1 pooling matrix
#   pscale: (1, H+W)   per-column 1/W (first H cols) / 1/H (last W cols), f32
#   w1/b1:  shared 1x1 conv with conv bias + eval-mode BN folded in, f32
#   wh/bh, ww/bw: per-direction 1x1 heads, f32
# Returns packed gates (C, H+W) f32: first H columns = a_h, last W = a_w.
# ---------------------------------------------------------------------------
def _packed_gates(x, pcat, pscale, w1, b1, wh, bh, ww, bw, h):
    xp = jnp.dot(x, pcat, preferred_element_type=jnp.float32) * pscale   # (C, H+W)
    z = jnp.dot(w1, xp, preferred_element_type=jnp.float32) + b1         # (L, H+W)
    z = z * jnp.clip(z + 3.0, 0.0, 6.0) * (1.0 / 6.0)                    # h_swish
    gh = jnp.dot(wh, z, preferred_element_type=jnp.float32) + bh         # (C, H+W)
    gw = jnp.dot(ww, z, preferred_element_type=jnp.float32) + bw         # (C, H+W)
    col = jax.lax.broadcasted_iota(jnp.int32, gh.shape, 1)
    return jax.nn.sigmoid(jnp.where(col < h, gh, gw))                    # (C, H+W)


def _expand_gates(packed, ehp, ewp):
    # gate[c, j] = packed[c, j // W] * packed[c, H + j % W]; the padded 0/1
    # expansion matrices do the select + broadcast on the MXU (lane-dense,
    # no sublane<->lane relayout).
    p = packed.astype(ehp.dtype)
    return (jnp.dot(p, ehp, preferred_element_type=jnp.float32) *
            jnp.dot(p, ewp, preferred_element_type=jnp.float32))


# ---------------------------------------------------------------------------
# Fused kernel: gates + apply on the still-resident (C, H*W) sample.
# ---------------------------------------------------------------------------
def _ca_fused_kernel(x_ref, pcat_ref, pscale_ref, w1_ref, b1_ref,
                     wh_ref, bh_ref, ww_ref, bw_ref, ehp_ref, ewp_ref,
                     o_ref, *, h):
    xv = x_ref[0]                                                        # (C, H*W)
    packed = _packed_gates(xv, pcat_ref[...], pscale_ref[...],
                           w1_ref[...], b1_ref[...], wh_ref[...], bh_ref[...],
                           ww_ref[...], bw_ref[...], h)
    gate = _expand_gates(packed, ehp_ref[...], ewp_ref[...])             # (C, H*W) f32
    o_ref[0] = (xv * gate.astype(xv.dtype)).astype(o_ref.dtype)


# ---------------------------------------------------------------------------
# Fallback kernels: per-sample packed gates, then pipelined elementwise apply.
# ---------------------------------------------------------------------------
def _ca_gates_kernel(x_ref, pcat_ref, pscale_ref, w1_ref, b1_ref,
                     wh_ref, bh_ref, ww_ref, bw_ref, g_ref, *, h):
    packed = _packed_gates(x_ref[0], pcat_ref[...], pscale_ref[...],
                           w1_ref[...], b1_ref[...], wh_ref[...], bh_ref[...],
                           ww_ref[...], bw_ref[...], h)
    g_ref[0] = packed.astype(g_ref.dtype)


def _ca_apply_kernel(x_ref, g_ref, ehp_ref, ewp_ref, o_ref):
    gate = _expand_gates(g_ref[...], ehp_ref[...], ewp_ref[...])
    o_ref[...] = (x_ref[...] * gate.astype(x_ref.dtype)).astype(o_ref.dtype)


def _apply_row_block(rows, row_bytes, budget=_APPLY_BLOCK_BYTES):
    """Fixed multiple-of-8 row block for the fallback apply (cdiv grid)."""
    cap = max(8, (budget // max(1, row_bytes)) // 8 * 8)
    return rows if rows <= cap else cap


def ca_block(x, params, *, force_two_kernel=False):
    """Forward pass of CABlock (eval-mode BatchNorm) on NCHW input."""
    n, c, h, w = x.shape
    hw, s = h * w, h + w
    f32 = jnp.float32
    # bf16 inputs: bf16 0/1 constants & bf16 gates (native MXU path); f32 stays f32.
    cdt = jnp.bfloat16 if x.dtype == jnp.bfloat16 else f32
    latent = params["w1"].shape[0]

    # ---- fold conv bias + eval-mode BatchNorm into the shared 1x1 conv ----
    # TODO(synk): training-mode BatchNorm (batch statistics over the packed
    # H+W axis) is not implemented; eval-mode folded affine only.
    w1 = params["w1"].astype(f32)                       # (L, C)
    b1 = params["b1"].reshape(-1).astype(f32)           # (L,)
    bn_g = params["bn_scale"].reshape(-1).astype(f32)   # (L,)
    bn_b = params["bn_shift"].reshape(-1).astype(f32)   # (L,)
    w1f = bn_g[:, None] * w1                            # (L, C)
    b1f = (bn_g * b1 + bn_b).reshape(latent, 1)         # (L, 1)
    wh = params["wh"].astype(f32)                       # (C, L)
    bh = params["bh"].reshape(c, 1).astype(f32)         # (C, 1)
    ww = params["ww"].astype(f32)                       # (C, L)
    bw = params["bw"].reshape(c, 1).astype(f32)         # (C, 1)

    # ---- constant 0/1 pooling / padded-expansion matrices ----
    j = jnp.arange(hw)
    row_of, col_of = j // w, j % w
    pool_h = row_of[:, None] == jnp.arange(h)[None, :]                    # (HW, H)
    pool_w = col_of[:, None] == jnp.arange(w)[None, :]                    # (HW, W)
    pcat = jnp.concatenate([pool_h, pool_w], axis=1).astype(cdt)          # (HW, H+W)
    pscale = jnp.concatenate([jnp.full((h,), 1.0 / w, f32),
                              jnp.full((w,), 1.0 / h, f32)]).reshape(1, s)
    ehp = jnp.concatenate([jnp.arange(h)[:, None] == row_of[None, :],
                           jnp.zeros((w, hw), bool)], axis=0).astype(cdt)  # (H+W, HW)
    ewp = jnp.concatenate([jnp.zeros((h, hw), bool),
                           jnp.arange(w)[:, None] == col_of[None, :]], axis=0).astype(cdt)

    x3 = x.reshape(n, c, hw)                             # free, contiguous reshape
    weight_args = (pcat, pscale, w1f, b1f, wh, bh, ww, bw)
    weight_specs = [_full_spec(a) for a in weight_args]
    # TODO(synk): at large H*W single-buffer the resident constants
    # (pipeline_mode=pl.Buffered(1)) instead of the default double buffering.

    per_sample = c * hw * x.dtype.itemsize
    const_bytes = (pcat.size + ehp.size + ewp.size) * jnp.dtype(cdt).itemsize
    fused_bytes = 4 * per_sample + 2 * c * hw * 4 + 2 * const_bytes
    use_fused = (not force_two_kernel) and fused_bytes <= _FUSED_BUDGET_BYTES

    compiler_params = pltpu.CompilerParams(
        dimension_semantics=("parallel",),
        vmem_limit_bytes=_VMEM_LIMIT_BYTES)

    if use_fused:
        # ---- single fused kernel: x read once, written once (2|x| HBM) ----
        # TODO(synk): when N < number of TensorCores the fused grid underfills
        # the megacore; a two-level (N, C-chunk) pipeline would be needed.
        out3 = pl.pallas_call(
            functools.partial(_ca_fused_kernel, h=h),
            out_shape=jax.ShapeDtypeStruct((n, c, hw), x.dtype),
            grid=(n,),
            in_specs=[pl.BlockSpec((1, c, hw), lambda i: (i, 0, 0)),
                      *weight_specs, _full_spec(ehp), _full_spec(ewp)],
            out_specs=pl.BlockSpec((1, c, hw), lambda i: (i, 0, 0)),
            compiler_params=compiler_params,
        )(x3, *weight_args, ehp, ewp)
        return out3.reshape(n, c, h, w)

    # ---- fallback: two-kernel split (per-sample gates, then apply) ----
    # TODO(synk): if even a single (C, H*W) sample does not fit in VMEM this
    # still fails; that case needs a channel-blocked pooling pipeline.
    gate_dtype = jnp.bfloat16 if x.dtype == jnp.bfloat16 else f32
    gates = pl.pallas_call(
        functools.partial(_ca_gates_kernel, h=h),
        out_shape=jax.ShapeDtypeStruct((n, c, s), gate_dtype),
        grid=(n,),
        in_specs=[pl.BlockSpec((1, c, hw), lambda i: (i, 0, 0)), *weight_specs],
        out_specs=pl.BlockSpec((1, c, s), lambda i: (i, 0, 0)),
        compiler_params=compiler_params,
    )(x3, *weight_args)

    rows = n * c
    x2 = x.reshape(rows, hw)
    g2 = gates.reshape(rows, s)
    rblk = _apply_row_block(rows, hw * x.dtype.itemsize)
    out2 = pl.pallas_call(
        _ca_apply_kernel,
        out_shape=jax.ShapeDtypeStruct((rows, hw), x.dtype),
        grid=(pl.cdiv(rows, rblk),),
        in_specs=[pl.BlockSpec((rblk, hw), lambda i: (i, 0)),
                  pl.BlockSpec((rblk, s), lambda i: (i, 0)),
                  _full_spec(ehp), _full_spec(ewp)],
        out_specs=pl.BlockSpec((rblk, hw), lambda i: (i, 0)),
        compiler_params=compiler_params,
    )(x2, g2, ehp, ewp)
    return out2.reshape(n, c, h, w)


# ---------------------------------------------------------------------------
# Parameter init (matches the PyTorch module's custom init, eval-mode BN).
# ---------------------------------------------------------------------------
def _xavier_normal(key, shape, gain):
    fan_out, fan_in = shape
    std = gain * math.sqrt(2.0 / (fan_in + fan_out))
    return (std * jax.random.normal(key, shape)).astype(jnp.float32)


def init_ca_block_params(key, num_channels, reduction=32):
    latent = max(8, num_channels // reduction)
    k1, k2, k3 = jax.random.split(key, 3)
    gain = math.sqrt(2.0) / math.sqrt(2.0)   # Conv2d init: xavier_normal(gain/sqrt(2))
    w1 = _xavier_normal(k1, (latent, num_channels), gain)      # (L, C)
    b1 = jnp.zeros((1, latent), jnp.float32)

    eps = 1e-5
    gamma = jnp.ones((latent,), jnp.float32)
    beta = jnp.zeros((latent,), jnp.float32)
    running_mean = jnp.zeros((latent,), jnp.float32)
    running_var = jnp.ones((latent,), jnp.float32)
    bn_scale = gamma / jnp.sqrt(running_var + eps)
    bn_shift = beta - running_mean * bn_scale

    wh = _xavier_normal(k2, (num_channels, latent), gain)       # (C, L)
    bh = jnp.zeros((1, num_channels), jnp.float32)
    ww = _xavier_normal(k3, (num_channels, latent), gain)       # (C, L)
    bw = jnp.zeros((1, num_channels), jnp.float32)

    return dict(w1=w1, b1=b1,
                bn_scale=bn_scale.reshape(1, -1), bn_shift=bn_shift.reshape(1, -1),
                wh=wh, bh=bh, ww=ww, bw=bw)


def ca_block_reference(x, params):
    """Pure-JAX reference of eval-mode CABlock (correctness check only)."""
    xf = x.astype(jnp.float32)
    n, c, h, w = x.shape
    xh = jnp.mean(xf, axis=3)                       # (N, C, H)
    xw = jnp.mean(xf, axis=2)                       # (N, C, W)
    y = jnp.concatenate([xh, xw], axis=2)           # (N, C, H+W)
    w1 = params["w1"]; b1 = params["b1"].reshape(-1)
    g = params["bn_scale"].reshape(-1); s = params["bn_shift"].reshape(-1)
    z = jnp.einsum("lc,ncs->nls", w1, y) + b1[None, :, None]
    z = z * g[None, :, None] + s[None, :, None]
    z = z * jnp.clip(z + 3.0, 0.0, 6.0) / 6.0
    zh, zw = z[..., :h], z[..., h:]
    ah = jax.nn.sigmoid(jnp.einsum("cl,nls->ncs", params["wh"], zh)
                        + params["bh"].reshape(-1)[None, :, None])
    aw = jax.nn.sigmoid(jnp.einsum("cl,nls->ncs", params["ww"], zw)
                        + params["bw"].reshape(-1)[None, :, None])
    return (xf * aw[:, :, None, :] * ah[:, :, :, None]).astype(x.dtype)


if __name__ == "__main__":
    key = jax.random.PRNGKey(0)
    kx, kp = jax.random.split(key)

    N, C, H, W = 2, 4, 16, 16
    x = jax.random.normal(kx, (N, C, H, W), dtype=jnp.float32)
    params = init_ca_block_params(kp, num_channels=C, reduction=32)
    ref = ca_block_reference(x, params)

    # Primary fused path.
    out = ca_block(x, params)
    jax.block_until_ready(out)
    assert out.shape == x.shape and out.dtype == x.dtype
    err = float(jnp.max(jnp.abs(out.astype(jnp.float32) - ref.astype(jnp.float32))))
    assert err < 1e-4, f"fused path: max abs error vs reference: {err}"

    # Two-kernel fallback path (large-sample regime), exercised explicitly.
    out2 = ca_block(x, params, force_two_kernel=True)
    jax.block_until_ready(out2)
    err2 = float(jnp.max(jnp.abs(out2.astype(jnp.float32) - ref.astype(jnp.float32))))
    assert err2 < 1e-4, f"fallback path: max abs error vs reference: {err2}"

    print("KERNEL_OK")
</pallas_src>

<mosaic_0001>
module attributes {stable_mosaic.version = 11 : i64} {
  func.func @_ca_fused_kernel(%arg0: i32, %arg1: memref<1x4x256xf32, #tpu.memory_space<vmem>>, %arg2: memref<256x32xf32, #tpu.memory_space<vmem>>, %arg3: memref<1x32xf32, #tpu.memory_space<vmem>>, %arg4: memref<8x4xf32, #tpu.memory_space<vmem>>, %arg5: memref<8x1xf32, #tpu.memory_space<vmem>>, %arg6: memref<4x8xf32, #tpu.memory_space<vmem>>, %arg7: memref<4x1xf32, #tpu.memory_space<vmem>>, %arg8: memref<4x8xf32, #tpu.memory_space<vmem>>, %arg9: memref<4x1xf32, #tpu.memory_space<vmem>>, %arg10: memref<32x256xf32, #tpu.memory_space<vmem>>, %arg11: memref<32x256xf32, #tpu.memory_space<vmem>>, %arg12: memref<1x4x256xf32, #tpu.memory_space<vmem>>) attributes {dimension_semantics = [#tpu.dimension_semantics<parallel>], iteration_bounds = array<i64: 2>, scalar_prefetch = 0 : i64, scratch_operands = 0 : i64, tpu.core_type = #tpu.core_type<tc>, window_params = [{transform_indices = @transform_0, window_bounds = array<i64: 1, 4, 256>}, {pipeline_mode = #tpu.pipeline_mode<synchronous>, transform_indices = @transform_1, window_bounds = array<i64: 256, 32>}, {pipeline_mode = #tpu.pipeline_mode<synchronous>, transform_indices = @transform_2, window_bounds = array<i64: 1, 32>}, {pipeline_mode = #tpu.pipeline_mode<synchronous>, transform_indices = @transform_3, window_bounds = array<i64: 8, 4>}, {pipeline_mode = #tpu.pipeline_mode<synchronous>, transform_indices = @transform_4, window_bounds = array<i64: 8, 1>}, {pipeline_mode = #tpu.pipeline_mode<synchronous>, transform_indices = @transform_5, window_bounds = array<i64: 4, 8>}, {pipeline_mode = #tpu.pipeline_mode<synchronous>, transform_indices = @transform_6, window_bounds = array<i64: 4, 1>}, {pipeline_mode = #tpu.pipeline_mode<synchronous>, transform_indices = @transform_7, window_bounds = array<i64: 4, 8>}, {pipeline_mode = #tpu.pipeline_mode<synchronous>, transform_indices = @transform_8, window_bounds = array<i64: 4, 1>}, {pipeline_mode = #tpu.pipeline_mode<synchronous>, transform_indices = @transform_9, window_bounds = array<i64: 32, 256>}, {pipeline_mode = #tpu.pipeline_mode<synchronous>, transform_indices = @transform_10, window_bounds = array<i64: 32, 256>}, {transform_indices = @transform_11, window_bounds = array<i64: 1, 4, 256>}]} {
    %c0 = arith.constant 0 : index
    %c0_0 = arith.constant 0 : index
    %c0_1 = arith.constant 0 : index
    %0 = vector.load %arg1[%c0, %c0_0, %c0_1] : memref<1x4x256xf32, #tpu.memory_space<vmem>>, vector<1x4x256xf32>
    %1 = vector.shape_cast %0 : vector<1x4x256xf32> to vector<4x256xf32>
    %c0_2 = arith.constant 0 : index
    %c0_3 = arith.constant 0 : index
    %2 = vector.load %arg2[%c0_2, %c0_3] : memref<256x32xf32, #tpu.memory_space<vmem>>, vector<256x32xf32>
    %c0_4 = arith.constant 0 : index
    %c0_5 = arith.constant 0 : index
    %3 = vector.load %arg3[%c0_4, %c0_5] : memref<1x32xf32, #tpu.memory_space<vmem>>, vector<1x32xf32>
    %c0_6 = arith.constant 0 : index
    %c0_7 = arith.constant 0 : index
    %4 = vector.load %arg4[%c0_6, %c0_7] : memref<8x4xf32, #tpu.memory_space<vmem>>, vector<8x4xf32>
    %c0_8 = arith.constant 0 : index
    %c0_9 = arith.constant 0 : index
    %5 = vector.load %arg5[%c0_8, %c0_9] : memref<8x1xf32, #tpu.memory_space<vmem>>, vector<8x1xf32>
    %c0_10 = arith.constant 0 : index
    %c0_11 = arith.constant 0 : index
    %6 = vector.load %arg6[%c0_10, %c0_11] : memref<4x8xf32, #tpu.memory_space<vmem>>, vector<4x8xf32>
    %c0_12 = arith.constant 0 : index
    %c0_13 = arith.constant 0 : index
    %7 = vector.load %arg7[%c0_12, %c0_13] : memref<4x1xf32, #tpu.memory_space<vmem>>, vector<4x1xf32>
    %c0_14 = arith.constant 0 : index
    %c0_15 = arith.constant 0 : index
    %8 = vector.load %arg8[%c0_14, %c0_15] : memref<4x8xf32, #tpu.memory_space<vmem>>, vector<4x8xf32>
    %c0_16 = arith.constant 0 : index
    %c0_17 = arith.constant 0 : index
    %9 = vector.load %arg9[%c0_16, %c0_17] : memref<4x1xf32, #tpu.memory_space<vmem>>, vector<4x1xf32>
    %cst = arith.constant dense<0.000000e+00> : vector<4x32xf32>
    %10 = tpu.matmul %1, %2, %cst {dimension_numbers = #tpu.dot_dimension_numbers<[1], [0], [0], [1], [0, 0, 1, 1], [], []>} : vector<4x256xf32>, vector<256x32xf32>, vector<4x32xf32> -> vector<4x32xf32>
    %11 = vector.broadcast %3 : vector<1x32xf32> to vector<4x32xf32>
    %12 = arith.mulf %10, %11 : vector<4x32xf32>
    %cst_18 = arith.constant dense<0.000000e+00> : vector<8x32xf32>
    %13 = tpu.matmul %4, %12, %cst_18 {dimension_numbers = #tpu.dot_dimension_numbers<[1], [0], [0], [1], [0, 0, 1, 1], [], []>} : vector<8x4xf32>, vector<4x32xf32>, vector<8x32xf32> -> vector<8x32xf32>
    %14 = vector.broadcast %5 : vector<8x1xf32> to vector<8x32xf32>
    %15 = arith.addf %13, %14 : vector<8x32xf32>
    %cst_19 = arith.constant 3.000000e+00 : f32
    %16 = vector.broadcast %cst_19 : f32 to vector<8x32xf32>
    %17 = arith.addf %15, %16 : vector<8x32xf32>
    %cst_20 = arith.constant 0.000000e+00 : f32
    %cst_21 = arith.constant 6.000000e+00 : f32
    %18 = vector.broadcast %cst_20 : f32 to vector<8x32xf32>
    %19 = arith.maximumf %18, %17 : vector<8x32xf32>
    %20 = vector.broadcast %cst_21 : f32 to vector<8x32xf32>
    %21 = arith.minimumf %20, %19 : vector<8x32xf32>
    %22 = arith.mulf %15, %21 : vector<8x32xf32>
    %cst_22 = arith.constant 0.166666672 : f32
    %23 = vector.broadcast %cst_22 : f32 to vector<8x32xf32>
    %24 = arith.mulf %22, %23 : vector<8x32xf32>
    %cst_23 = arith.constant dense<0.000000e+00> : vector<4x32xf32>
    %25 = tpu.matmul %6, %24, %cst_23 {dimension_numbers = #tpu.dot_dimension_numbers<[1], [0], [0], [1], [0, 0, 1, 1], [], []>} : vector<4x8xf32>, vector<8x32xf32>, vector<4x32xf32> -> vector<4x32xf32>
    %26 = vector.broadcast %7 : vector<4x1xf32> to vector<4x32xf32>
    %27 = arith.addf %25, %26 : vector<4x32xf32>
    %cst_24 = arith.constant dense<0.000000e+00> : vector<4x32xf32>
    %28 = tpu.matmul %8, %24, %cst_24 {dimension_numbers = #tpu.dot_dimension_numbers<[1], [0], [0], [1], [0, 0, 1, 1], [], []>} : vector<4x8xf32>, vector<8x32xf32>, vector<4x32xf32> -> vector<4x32xf32>
    %29 = vector.broadcast %9 : vector<4x1xf32> to vector<4x32xf32>
    %30 = arith.addf %28, %29 : vector<4x32xf32>
    %31 = tpu.iota {dimensions = array<i32: 1>} : vector<4x32xi32>
    %c16_i32 = arith.constant 16 : i32
    %32 = vector.broadcast %c16_i32 : i32 to vector<4x32xi32>
    %33 = arith.cmpi slt, %31, %32 : vector<4x32xi32>
    %34 = arith.select %33, %27, %30 : vector<4x32xi1>, vector<4x32xf32>
    %35 = arith.negf %34 : vector<4x32xf32>
    %36 = math.exp %35 : vector<4x32xf32>
    %cst_25 = arith.constant 1.000000e+00 : f32
    %37 = vector.broadcast %cst_25 : f32 to vector<4x32xf32>
    %38 = arith.addf %37, %36 : vector<4x32xf32>
    %39 = arith.divf %37, %38 : vector<4x32xf32>
    %c0_26 = arith.constant 0 : index
    %c0_27 = arith.constant 0 : index
    %40 = vector.load %arg10[%c0_26, %c0_27] : memref<32x256xf32, #tpu.memory_space<vmem>>, vector<32x256xf32>
    %c0_28 = arith.constant 0 : index
    %c0_29 = arith.constant 0 : index
    %41 = vector.load %arg11[%c0_28, %c0_29] : memref<32x256xf32, #tpu.memory_space<vmem>>, vector<32x256xf32>
    %cst_30 = arith.constant dense<0.000000e+00> : vector<4x256xf32>
    %42 = tpu.matmul %39, %40, %cst_30 {dimension_numbers = #tpu.dot_dimension_numbers<[1], [0], [0], [1], [0, 0, 1, 1], [], []>} : vector<4x32xf32>, vector<32x256xf32>, vector<4x256xf32> -> vector<4x256xf32>
    %cst_31 = arith.constant dense<0.000000e+00> : vector<4x256xf32>
    %43 = tpu.matmul %39, %41, %cst_31 {dimension_numbers = #tpu.dot_dimension_numbers<[1], [0], [0], [1], [0, 0, 1, 1], [], []>} : vector<4x32xf32>, vector<32x256xf32>, vector<4x256xf32> -> vector<4x256xf32>
    %44 = arith.mulf %42, %43 : vector<4x256xf32>
    %45 = arith.mulf %1, %44 : vector<4x256xf32>
    %c0_32 = arith.constant 0 : index
    %c0_33 = arith.constant 0 : index
    %c0_34 = arith.constant 0 : index
    %46 = vector.load %arg12[%c0_32, %c0_33, %c0_34] : memref<1x4x256xf32, #tpu.memory_space<vmem>>, vector<1x4x256xf32>
    %47 = vector.shape_cast %46 : vector<1x4x256xf32> to vector<4x256xf32>
    %48 = vector.shape_cast %45 : vector<4x256xf32> to vector<1x4x256xf32>
    tpu.vector_store %arg12[%c0_32, %c0_33, %c0_34], %48 {strides = array<i32>} : memref<1x4x256xf32, #tpu.memory_space<vmem>>, vector<1x4x256xf32>,
    return
  }
  func.func @transform_0(%arg0: i32) -> (i32, i32, i32) {
    %c0_i32 = arith.constant 0 : i32
    %c0_i32_0 = arith.constant 0 : i32
    %c0_i32_1 = arith.constant 0 : i32
    return %arg0, %c0_i32, %c0_i32_0 : i32, i32, i32
  }
  func.func @transform_1(%arg0: i32) -> (i32, i32) {
    %c0_i32 = arith.constant 0 : i32
    %c0_i32_0 = arith.constant 0 : i32
    %c0_i32_1 = arith.constant 0 : i32
    return %c0_i32, %c0_i32_0 : i32, i32
  }
  func.func @transform_2(%arg0: i32) -> (i32, i32) {
    %c0_i32 = arith.constant 0 : i32
    %c0_i32_0 = arith.constant 0 : i32
    %c0_i32_1 = arith.constant 0 : i32
    return %c0_i32, %c0_i32_0 : i32, i32
  }
  func.func @transform_3(%arg0: i32) -> (i32, i32) {
    %c0_i32 = arith.constant 0 : i32
    %c0_i32_0 = arith.constant 0 : i32
    %c0_i32_1 = arith.constant 0 : i32
    return %c0_i32, %c0_i32_0 : i32, i32
  }
  func.func @transform_4(%arg0: i32) -> (i32, i32) {
    %c0_i32 = arith.constant 0 : i32
    %c0_i32_0 = arith.constant 0 : i32
    %c0_i32_1 = arith.constant 0 : i32
    return %c0_i32, %c0_i32_0 : i32, i32
  }
  func.func @transform_5(%arg0: i32) -> (i32, i32) {
    %c0_i32 = arith.constant 0 : i32
    %c0_i32_0 = arith.constant 0 : i32
    %c0_i32_1 = arith.constant 0 : i32
    return %c0_i32, %c0_i32_0 : i32, i32
  }
  func.func @transform_6(%arg0: i32) -> (i32, i32) {
    %c0_i32 = arith.constant 0 : i32
    %c0_i32_0 = arith.constant 0 : i32
    %c0_i32_1 = arith.constant 0 : i32
    return %c0_i32, %c0_i32_0 : i32, i32
  }
  func.func @transform_7(%arg0: i32) -> (i32, i32) {
    %c0_i32 = arith.constant 0 : i32
    %c0_i32_0 = arith.constant 0 : i32
    %c0_i32_1 = arith.constant 0 : i32
    return %c0_i32, %c0_i32_0 : i32, i32
  }
  func.func @transform_8(%arg0: i32) -> (i32, i32) {
    %c0_i32 = arith.constant 0 : i32
    %c0_i32_0 = arith.constant 0 : i32
    %c0_i32_1 = arith.constant 0 : i32
    return %c0_i32, %c0_i32_0 : i32, i32
  }
  func.func @transform_9(%arg0: i32) -> (i32, i32) {
    %c0_i32 = arith.constant 0 : i32
    %c0_i32_0 = arith.constant 0 : i32
    %c0_i32_1 = arith.constant 0 : i32
    return %c0_i32, %c0_i32_0 : i32, i32
  }
  func.func @transform_10(%arg0: i32) -> (i32, i32) {
    %c0_i32 = arith.constant 0 : i32
    %c0_i32_0 = arith.constant 0 : i32
    %c0_i32_1 = arith.constant 0 : i32
    return %c0_i32, %c0_i32_0 : i32, i32
  }
  func.func @transform_11(%arg0: i32) -> (i32, i32, i32) {
    %c0_i32 = arith.constant 0 : i32
    %c0_i32_0 = arith.constant 0 : i32
    %c0_i32_1 = arith.constant 0 : i32
    return %arg0, %c0_i32, %c0_i32_0 : i32, i32, i32
  }
}

</mosaic_0001>

<llo_original>
// kernel: tpu_custom_call.1
$region0: #{tpu_custom_call.1}
  #allocation0 [shape = 'u32[]', space=smem, size = 0x4, offset = 0x4, fixed_abs, tag = 'smem constant byte address 0x4 - core index']
  #allocation1 [shape = 'u32[144,128]{1,0:T(1,128)}', space=vmem, size = 0x12000, scoped, tag = 'internal scratch']
  %s0 = inlined_call_operand.vmem [shape: f32[2,4,256], index: 0, kind: input, shape index: {}]
  %s1 = inlined_call_operand.vmem [shape: f32[256,32], index: 1, kind: input, shape index: {}]
  %s2 = inlined_call_operand.vmem [shape: f32[1,32], index: 2, kind: input, shape index: {}]
  %s3 = inlined_call_operand.vmem [shape: f32[8,4], index: 3, kind: input, shape index: {}]
  %s4 = inlined_call_operand.vmem [shape: f32[8,1], index: 4, kind: input, shape index: {}]
  %s5 = inlined_call_operand.vmem [shape: f32[4,8], index: 5, kind: input, shape index: {}]
  %s6 = inlined_call_operand.vmem [shape: f32[4,1], index: 6, kind: input, shape index: {}]
  %s7 = inlined_call_operand.vmem [shape: f32[4,8], index: 7, kind: input, shape index: {}]
  %s8 = inlined_call_operand.vmem [shape: f32[4,1], index: 8, kind: input, shape index: {}]
  %s9 = inlined_call_operand.vmem [shape: f32[32,256], index: 9, kind: input, shape index: {}]
  %s10 = inlined_call_operand.vmem [shape: f32[32,256], index: 10, kind: input, shape index: {}]
  %s11 = inlined_call_operand.hbm [shape: f32[2,4,256], index: 11, kind: output, shape index: {}]
  %s12 = sld [smem:[#allocation0]]
  $region77: #{tpu_custom_call.1} parent=0
    _
  %s14 = ssub.s32 1, %s12
  %s15 = scalar_select 0, %s14, %s12
  $region1: #{tpu_custom_call.1} parent=0
    #allocation2 [shape = 'u8[8192]{0}', space=vmem, size = 0x2000, scoped, tag = 'output window, operand 0']
    #allocation3 [shape = 's32[2]{0}', space=sflag, size = 0x8, scoped, tag = 'scoped memory for tpu_custom_call.1']
    %16 = vsyncpa [#allocation3], 0
    %s17 = scalar_lea.sflag [#allocation3], 1
    %18 = vsyncpa %s17, 0
    loop: start=0, step=1, limit=4
    $region2: #{tpu_custom_call.1} parent=1 // loop_pre_header
      _
    $region3: #{tpu_custom_call.1} parent=1 // loop_header
      %s20 = sphi 0, %s24
      %p21 = scmp.ge.s32.totalorder %s20, 4
      %s30 = sphi 0, %s32
      %s33 = sphi 0, %s30
      %s34 = sphi 0, %s33
      %s50 = sphi 0, %s34
      %s54 = sphi 0, %s54
      %s56 = sphi 0, %s54
      %s57 = sphi 0, %s56
      %s71 = sphi 0, %s57
      %s75 = sphi 0, %s75
      %s77 = sphi 0, %s75
      %s78 = sphi 0, %s77
      %s92 = sphi 0, %s78
      %s96 = sphi 0, %s96
      %s98 = sphi 0, %s96
      %s99 = sphi 0, %s98
      %s113 = sphi 0, %s99
      %s117 = sphi 0, %s117
      %s119 = sphi 0, %s117
      %s120 = sphi 0, %s119
      %s134 = sphi 0, %s120
      %s138 = sphi 0, %s138
      %s140 = sphi 0, %s138
      %s141 = sphi 0, %s140
      %s155 = sphi 0, %s141
      %s159 = sphi 0, %s159
      %s161 = sphi 0, %s159
      %s162 = sphi 0, %s161
      %s176 = sphi 0, %s162
      %s180 = sphi 0, %s180
      %s182 = sphi 0, %s180
      %s183 = sphi 0, %s182
      %s197 = sphi 0, %s183
      %s201 = sphi 0, %s201
      %s203 = sphi 0, %s201
      %s204 = sphi 0, %s203
      %s218 = sphi 0, %s204
      %s222 = sphi 0, %s222
      %s224 = sphi 0, %s222
      %s225 = sphi 0, %s224
      %s239 = sphi 0, %s225
      %s243 = sphi 0, %s243
      %s245 = sphi 0, %s243
      %s246 = sphi 0, %s245
      %s260 = sphi 0, %s246
      %s266 = sphi 0, %s268
      %s269 = sphi 0, %s266
      %s270 = sphi 0, %s269
      %s286 = sphi 0, %s270
    $region4: #{tpu_custom_call.1} parent=1 // loop_header_branch
      %23 = sbr.rel (%p21) target = $region8
    $region5: #{tpu_custom_call.1} parent=1 // loop_body
      %s25 = ssub.s32 %s20, 1
      %s26 = ssub.s32 %s20, 2
      %s27 = sadd.s32 %s20, 1
      %s28 = ssub.s32 %s20, %s27
      %p29 = scmp.eq.s32.totalorder %s28, 0
      %s31 = sadd.s32 %s30, 1
      %s32 = scalar_select %p29, %s30, %s31
      %p35 = pneg %p29
      %p36 = scmp.eq.s32.totalorder %s20, 1
      %p37 = por %p35, %p36
      %p38 = scmp.ne.s32.totalorder %s30, %s33
      %p39 = scmp.eq.s32.totalorder %s20, 0
      %p40 = por %p38, %p39
      %p41 = scmp.ne.s32.totalorder %s30, %s33
      %p42 = scmp.eq.s32.totalorder %s25, 1
      %p43 = por %p41, %p42
      %p44 = scmp.ne.s32.totalorder %s33, %s34
      %p45 = scmp.eq.s32.totalorder %s25, 0
      %p46 = por %p44, %p45
      %p47 = scmp.ne.s32.totalorder %s33, %s34
      %p48 = scmp.eq.s32.totalorder %s26, 1
      %p49 = por %p47, %p48
      %p51 = scmp.ne.s32.totalorder %s34, %s50
      %p52 = scmp.eq.s32.totalorder %s26, 0
      %p53 = por %p51, %p52
      %s55 = sadd.s32 %s54, 1
      %p58 = scmp.eq.s32.totalorder %s20, 1
      %p59 = scmp.ne.s32.totalorder %s54, %s56
      %p60 = scmp.eq.s32.totalorder %s20, 0
      %p61 = por %p59, %p60
      %p62 = scmp.ne.s32.totalorder %s54, %s56
      %p63 = scmp.eq.s32.totalorder %s25, 1
      %p64 = por %p62, %p63
      %p65 = scmp.ne.s32.totalorder %s56, %s57
      %p66 = scmp.eq.s32.totalorder %s25, 0
      %p67 = por %p65, %p66
      %p68 = scmp.ne.s32.totalorder %s56, %s57
      %p69 = scmp.eq.s32.totalorder %s26, 1
      %p70 = por %p68, %p69
      %p72 = scmp.ne.s32.totalorder %s57, %s71
      %p73 = scmp.eq.s32.totalorder %s26, 0
      %p74 = por %p72, %p73
      %s76 = sadd.s32 %s75, 1
      %p79 = scmp.eq.s32.totalorder %s20, 1
      %p80 = scmp.ne.s32.totalorder %s75, %s77
      %p81 = scmp.eq.s32.totalorder %s20, 0
      %p82 = por %p80, %p81
      %p83 = scmp.ne.s32.totalorder %s75, %s77
      %p84 = scmp.eq.s32.totalorder %s25, 1
      %p85 = por %p83, %p84
      %p86 = scmp.ne.s32.totalorder %s77, %s78
      %p87 = scmp.eq.s32.totalorder %s25, 0
      %p88 = por %p86, %p87
      %p89 = scmp.ne.s32.totalorder %s77, %s78
      %p90 = scmp.eq.s32.totalorder %s26, 1
      %p91 = por %p89, %p90
      %p93 = scmp.ne.s32.totalorder %s78, %s92
      %p94 = scmp.eq.s32.totalorder %s26, 0
      %p95 = por %p93, %p94
      %s97 = sadd.s32 %s96, 1
      %p100 = scmp.eq.s32.totalorder %s20, 1
      %p101 = scmp.ne.s32.totalorder %s96, %s98
      %p102 = scmp.eq.s32.totalorder %s20, 0
      %p103 = por %p101, %p102
      %p104 = scmp.ne.s32.totalorder %s96, %s98
      %p105 = scmp.eq.s32.totalorder %s25, 1
      %p106 = por %p104, %p105
      %p107 = scmp.ne.s32.totalorder %s98, %s99
      %p108 = scmp.eq.s32.totalorder %s25, 0
      %p109 = por %p107, %p108
      %p110 = scmp.ne.s32.totalorder %s98, %s99
      %p111 = scmp.eq.s32.totalorder %s26, 1
      %p112 = por %p110, %p111
      %p114 = scmp.ne.s32.totalorder %s99, %s113
      %p115 = scmp.eq.s32.totalorder %s26, 0
      %p116 = por %p114, %p115
      %s118 = sadd.s32 %s117, 1
      %p121 = scmp.eq.s32.totalorder %s20, 1
      %p122 = scmp.ne.s32.totalorder %s117, %s119
      %p123 = scmp.eq.s32.totalorder %s20, 0
      %p124 = por %p122, %p123
      %p125 = scmp.ne.s32.totalorder %s117, %s119
      %p126 = scmp.eq.s32.totalorder %s25, 1
      %p127 = por %p125, %p126
      %p128 = scmp.ne.s32.totalorder %s119, %s120
      %p129 = scmp.eq.s32.totalorder %s25, 0
      %p130 = por %p128, %p129
      %p131 = scmp.ne.s32.totalorder %s119, %s120
      %p132 = scmp.eq.s32.totalorder %s26, 1
      %p133 = por %p131, %p132
      %p135 = scmp.ne.s32.totalorder %s120, %s134
      %p136 = scmp.eq.s32.totalorder %s26, 0
      %p137 = por %p135, %p136
      %s139 = sadd.s32 %s138, 1
      %p142 = scmp.eq.s32.totalorder %s20, 1
      %p143 = scmp.ne.s32.totalorder %s138, %s140
      %p144 = scmp.eq.s32.totalorder %s20, 0
      %p145 = por %p143, %p144
      %p146 = scmp.ne.s32.totalorder %s138, %s140
      %p147 = scmp.eq.s32.totalorder %s25, 1
      %p148 = por %p146, %p147
      %p149 = scmp.ne.s32.totalorder %s140, %s141
      %p150 = scmp.eq.s32.totalorder %s25, 0
      %p151 = por %p149, %p150
      %p152 = scmp.ne.s32.totalorder %s140, %s141
      %p153 = scmp.eq.s32.totalorder %s26, 1
      %p154 = por %p152, %p153
      %p156 = scmp.ne.s32.totalorder %s141, %s155
      %p157 = scmp.eq.s32.totalorder %s26, 0
      %p158 = por %p156, %p157
      %s160 = sadd.s32 %s159, 1
      %p163 = scmp.eq.s32.totalorder %s20, 1
      %p164 = scmp.ne.s32.totalorder %s159, %s161
      %p165 = scmp.eq.s32.totalorder %s20, 0
      %p166 = por %p164, %p165
      %p167 = scmp.ne.s32.totalorder %s159, %s161
      %p168 = scmp.eq.s32.totalorder %s25, 1
      %p169 = por %p167, %p168
      %p170 = scmp.ne.s32.totalorder %s161, %s162
      %p171 = scmp.eq.s32.totalorder %s25, 0
      %p172 = por %p170, %p171
      %p173 = scmp.ne.s32.totalorder %s161, %s162
      %p174 = scmp.eq.s32.totalorder %s26, 1
      %p175 = por %p173, %p174
      %p177 = scmp.ne.s32.totalorder %s162, %s176
      %p178 = scmp.eq.s32.totalorder %s26, 0
      %p179 = por %p177, %p178
      %s181 = sadd.s32 %s180, 1
      %p184 = scmp.eq.s32.totalorder %s20, 1
      %p185 = scmp.ne.s32.totalorder %s180, %s182
      %p186 = scmp.eq.s32.totalorder %s20, 0
      %p187 = por %p185, %p186
      %p188 = scmp.ne.s32.totalorder %s180, %s182
      %p189 = scmp.eq.s32.totalorder %s25, 1
      %p190 = por %p188, %p189
      %p191 = scmp.ne.s32.totalorder %s182, %s183
      %p192 = scmp.eq.s32.totalorder %s25, 0
      %p193 = por %p191, %p192
      %p194 = scmp.ne.s32.totalorder %s182, %s183
      %p195 = scmp.eq.s32.totalorder %s26, 1
      %p196 = por %p194, %p195
      %p198 = scmp.ne.s32.totalorder %s183, %s197
      %p199 = scmp.eq.s32.totalorder %s26, 0
      %p200 = por %p198, %p199
      %s202 = sadd.s32 %s201, 1
      %p205 = scmp.eq.s32.totalorder %s20, 1
      %p206 = scmp.ne.s32.totalorder %s201, %s203
      %p207 = scmp.eq.s32.totalorder %s20, 0
      %p208 = por %p206, %p207
      %p209 = scmp.ne.s32.totalorder %s201, %s203
      %p210 = scmp.eq.s32.totalorder %s25, 1
      %p211 = por %p209, %p210
      %p212 = scmp.ne.s32.totalorder %s203, %s204
      %p213 = scmp.eq.s32.totalorder %s25, 0
      %p214 = por %p212, %p213
      %p215 = scmp.ne.s32.totalorder %s203, %s204
      %p216 = scmp.eq.s32.totalorder %s26, 1
      %p217 = por %p215, %p216
      %p219 = scmp.ne.s32.totalorder %s204, %s218
      %p220 = scmp.eq.s32.totalorder %s26, 0
      %p221 = por %p219, %p220
      %s223 = sadd.s32 %s222, 1
      %p226 = scmp.eq.s32.totalorder %s20, 1
      %p227 = scmp.ne.s32.totalorder %s222, %s224
      %p228 = scmp.eq.s32.totalorder %s20, 0
      %p229 = por %p227, %p228
      %p230 = scmp.ne.s32.totalorder %s222, %s224
      %p231 = scmp.eq.s32.totalorder %s25, 1
      %p232 = por %p230, %p231
      %p233 = scmp.ne.s32.totalorder %s224, %s225
      %p234 = scmp.eq.s32.totalorder %s25, 0
      %p235 = por %p233, %p234
      %p236 = scmp.ne.s32.totalorder %s224, %s225
      %p237 = scmp.eq.s32.totalorder %s26, 1
      %p238 = por %p236, %p237
      %p240 = scmp.ne.s32.totalorder %s225, %s239
      %p241 = scmp.eq.s32.totalorder %s26, 0
      %p242 = por %p240, %p241
      %s244 = sadd.s32 %s243, 1
      %p247 = scmp.eq.s32.totalorder %s20, 1
      %p248 = scmp.ne.s32.totalorder %s243, %s245
      %p249 = scmp.eq.s32.totalorder %s20, 0
      %p250 = por %p248, %p249
      %p251 = scmp.ne.s32.totalorder %s243, %s245
      %p252 = scmp.eq.s32.totalorder %s25, 1
      %p253 = por %p251, %p252
      %p254 = scmp.ne.s32.totalorder %s245, %s246
      %p255 = scmp.eq.s32.totalorder %s25, 0
      %p256 = por %p254, %p255
      %p257 = scmp.ne.s32.totalorder %s245, %s246
      %p258 = scmp.eq.s32.totalorder %s26, 1
      %p259 = por %p257, %p258
      %p261 = scmp.ne.s32.totalorder %s246, %s260
      %p262 = scmp.eq.s32.totalorder %s26, 0
      %p263 = por %p261, %p262
      %s264 = ssub.s32 %s20, %s27
      %p265 = scmp.eq.s32.totalorder %s264, 0
      %s267 = sadd.s32 %s266, 1
      %s268 = scalar_select %p265, %s266, %s267
      %p271 = pneg %p265
      %p272 = scmp.eq.s32.totalorder %s20, 1
      %p273 = por %p271, %p272
      %p274 = scmp.ne.s32.totalorder %s266, %s269
      %p275 = scmp.eq.s32.totalorder %s20, 0
      %p276 = por %p274, %p275
      %p277 = scmp.ne.s32.totalorder %s266, %s269
      %p278 = scmp.eq.s32.totalorder %s25, 1
      %p279 = por %p277, %p278
      %p280 = scmp.ne.s32.totalorder %s269, %s270
      %p281 = scmp.eq.s32.totalorder %s25, 0
      %p282 = por %p280, %p281
      %p283 = scmp.ne.s32.totalorder %s269, %s270
      %p284 = scmp.eq.s32.totalorder %s26, 1
      %p285 = por %p283, %p284
      %p287 = scmp.ne.s32.totalorder %s270, %s286
      %p288 = scmp.eq.s32.totalorder %s26, 0
      %p289 = por %p287, %p288
      %p290 = scmp.le.s32.totalorder 1, %s20
      %p291 = scmp.lt.s32.totalorder %s20, 3
      %p292 = pnand %p290, %p291
      %p293 = pneg %p292
      // Predicated region
      $region9: #{tpu_custom_call.1} parent=5 // pred_check
        _
      $region10: #{tpu_custom_call.1} parent=5 // pred_check_branch
        %295 = sbr.rel (%p292) target = $region12
      $region11: #{tpu_custom_call.1} parent=5 // pred_region
        %s296 = ssub.s32 %s20, 1
        // Predicated region
        $region13: #{tpu_custom_call.1} parent=11 // pred_check
          %p297 = pneg %p67
        $region14: #{tpu_custom_call.1} parent=11 // pred_check_branch
          %299 = sbr.rel (%p297) target = $region16
        $region15: #{tpu_custom_call.1} parent=11 // pred_region
          _
        $region16: #{tpu_custom_call.1} parent=11 // pred_fallthru
          _
        // Predicated region
        $region17: #{tpu_custom_call.1} parent=11 // pred_check
          %p300 = pneg %p88
        $region18: #{tpu_custom_call.1} parent=11 // pred_check_branch
          %302 = sbr.rel (%p300) target = $region20
        $region19: #{tpu_custom_call.1} parent=11 // pred_region
          _
        $region20: #{tpu_custom_call.1} parent=11 // pred_fallthru
          _
        // Predicated region
        $region21: #{tpu_custom_call.1} parent=11 // pred_check
          %p303 = pneg %p109
        $region22: #{tpu_custom_call.1} parent=11 // pred_check_branch
          %305 = sbr.rel (%p303) target = $region24
        $region23: #{tpu_custom_call.1} parent=11 // pred_region
          _
        $region24: #{tpu_custom_call.1} parent=11 // pred_fallthru
          _
        // Predicated region
        $region25: #{tpu_custom_call.1} parent=11 // pred_check
          %p306 = pneg %p130
        $region26: #{tpu_custom_call.1} parent=11 // pred_check_branch
          %308 = sbr.rel (%p306) target = $region28
        $region27: #{tpu_custom_call.1} parent=11 // pred_region
          _
        $region28: #{tpu_custom_call.1} parent=11 // pred_fallthru
          _
        // Predicated region
        $region29: #{tpu_custom_call.1} parent=11 // pred_check
          %p309 = pneg %p151
        $region30: #{tpu_custom_call.1} parent=11 // pred_check_branch
          %311 = sbr.rel (%p309) target = $region32
        $region31: #{tpu_custom_call.1} parent=11 // pred_region
          _
        $region32: #{tpu_custom_call.1} parent=11 // pred_fallthru
          _
        // Predicated region
        $region33: #{tpu_custom_call.1} parent=11 // pred_check
          %p312 = pneg %p172
        $region34: #{tpu_custom_call.1} parent=11 // pred_check_branch
          %314 = sbr.rel (%p312) target = $region36
        $region35: #{tpu_custom_call.1} parent=11 // pred_region
          _
        $region36: #{tpu_custom_call.1} parent=11 // pred_fallthru
          _
        // Predicated region
        $region37: #{tpu_custom_call.1} parent=11 // pred_check
          %p315 = pneg %p193
        $region38: #{tpu_custom_call.1} parent=11 // pred_check_branch
          %317 = sbr.rel (%p315) target = $region40
        $region39: #{tpu_custom_call.1} parent=11 // pred_region
          _
        $region40: #{tpu_custom_call.1} parent=11 // pred_fallthru
          _
        // Predicated region
        $region41: #{tpu_custom_call.1} parent=11 // pred_check
          %p318 = pneg %p214
        $region42: #{tpu_custom_call.1} parent=11 // pred_check_branch
          %320 = sbr.rel (%p318) target = $region44
        $region43: #{tpu_custom_call.1} parent=11 // pred_region
          _
        $region44: #{tpu_custom_call.1} parent=11 // pred_fallthru
          _
        // Predicated region
        $region45: #{tpu_custom_call.1} parent=11 // pred_check
          %p321 = pneg %p235
        $region46: #{tpu_custom_call.1} parent=11 // pred_check_branch
          %323 = sbr.rel (%p321) target = $region48
        $region47: #{tpu_custom_call.1} parent=11 // pred_region
          _
        $region48: #{tpu_custom_call.1} parent=11 // pred_fallthru
          _
        // Predicated region
        $region49: #{tpu_custom_call.1} parent=11 // pred_check
          %p324 = pneg %p256
        $region50: #{tpu_custom_call.1} parent=11 // pred_check_branch
          %326 = sbr.rel (%p324) target = $region52
        $region51: #{tpu_custom_call.1} parent=11 // pred_region
          _
        $region52: #{tpu_custom_call.1} parent=11 // pred_fallthru
          _
      $region12: #{tpu_custom_call.1} parent=5 // pred_fallthru
        _
      %p327 = scmp.lt.s32.totalorder %s20, 2
      // Predicated region
      $region53: #{tpu_custom_call.1} parent=5 // pred_check
        %p328 = pneg %p327
      $region54: #{tpu_custom_call.1} parent=5 // pred_check_branch
        %330 = sbr.rel (%p328) target = $region56
      $region55: #{tpu_custom_call.1} parent=5 // pred_region
        // Predicated region
        $region57: #{tpu_custom_call.1} parent=55 // pred_check
          %p331 = pneg %p40
        $region58: #{tpu_custom_call.1} parent=55 // pred_check_branch
          %333 = sbr.rel (%p331) target = $region60
        $region59: #{tpu_custom_call.1} parent=55 // pred_region
          %p334 = scmp.lt.s32.totalorder %s20, 1
          %s335 = scalar_select %p334, %s20, 1
          %s336 = smul.addr %s335, 2
          %s337 = smul.addr %s336, 4
          %s338 = scalar_lea.vmem %s0, %s337
        $region60: #{tpu_custom_call.1} parent=55 // pred_fallthru
          _
      $region56: #{tpu_custom_call.1} parent=5 // pred_fallthru
        _
      %p339 = scmp.le.s32.totalorder 1, %s20
      %p340 = scmp.lt.s32.totalorder %s20, 3
      %p341 = pnand %p339, %p340
      %p342 = pneg %p341
      // Predicated region
      $region61: #{tpu_custom_call.1} parent=5 // pred_check
        _
      $region62: #{tpu_custom_call.1} parent=5 // pred_check_branch
        %344 = sbr.rel (%p341) target = $region64
      $region63: #{tpu_custom_call.1} parent=5 // pred_region
        %s345 = ssub.s32 %s20, 1
        %p346 = scmp.lt.s32.totalorder %s25, 1
        %s347 = scalar_select %p346, %s25, 1
        %s348 = smul.addr %s347, 2
        %s349 = smul.addr %s348, 4
        %s350 = scalar_lea.vmem %s0, %s349
        %p351 = pneg %p46
        %p352 = pneg %p43
        %p353 = pneg %p67
        %p354 = pneg %p64
        %p355 = pneg %p88
        %p356 = pneg %p85
        %p357 = pneg %p109
        %p358 = pneg %p106
        %p359 = pneg %p130
        %p360 = pneg %p127
        %p361 = pneg %p151
        %p362 = pneg %p148
        %p363 = pneg %p172
        %p364 = pneg %p169
        %p365 = pneg %p193
        %p366 = pneg %p190
        %p367 = pneg %p214
        %p368 = pneg %p211
        %p369 = pneg %p235
        %p370 = pneg %p232
        %p371 = pneg %p256
        %p372 = pneg %p253
        %p373 = pneg %p282
        %p374 = pneg %p279
        %s375 = sand.u32 %s269, 1
        %s376 = scalar_lea.sflag [#allocation3], %s375
        %s377 = sand.u32 %s269, 1
        %s378 = smul.addr %s377, 8
        %s379 = scalar_lea.vmem [#allocation2], %s378
        %p380 = scmp.lt.s32.totalorder %s25, 1
        %s381 = scalar_select %p380, %s25, 1
        %s382 = smul.addr %s381, 2
        %s383 = smul.addr %s382, 4
        %s384 = scalar_lea.vmem %s0, %s383
        %v385 = vld [vmem:[%s384] sm:$0xff]
        %v386 = vld [vmem:[%s1] sm:$0xff]
        %v387 = vld [vmem:[%s1 + $0x8] sm:$0xff]
        %v388 = vld [vmem:[%s1 + $0x10] sm:$0xff]
        %v389 = vld [vmem:[%s1 + $0x18] sm:$0xff]
        %v390 = vld [vmem:[%s1 + $0x20] sm:$0xff]
        %v391 = vld [vmem:[%s1 + $0x28] sm:$0xff]
        %v392 = vld [vmem:[%s1 + $0x30] sm:$0xff]
        %v393 = vld [vmem:[%s1 + $0x38] sm:$0xff]
        %v394 = vld [vmem:[%s1 + $0x40] sm:$0xff]
        %v395 = vld [vmem:[%s1 + $0x48] sm:$0xff]
        %v396 = vld [vmem:[%s1 + $0x50] sm:$0xff]
        %v397 = vld [vmem:[%s1 + $0x58] sm:$0xff]
        %v398 = vld [vmem:[%s1 + $0x60] sm:$0xff]
        %v399 = vld [vmem:[%s1 + $0x68] sm:$0xff]
        %v400 = vld [vmem:[%s1 + $0x70] sm:$0xff]
        %v401 = vld [vmem:[%s1 + $0x78] sm:$0xff]
        %v402 = vld [vmem:[%s1 + $0x80] sm:$0xff]
        %v403 = vld [vmem:[%s1 + $0x88] sm:$0xff]
        %v404 = vld [vmem:[%s1 + $0x90] sm:$0xff]
        %v405 = vld [vmem:[%s1 + $0x98] sm:$0xff]
        %v406 = vld [vmem:[%s1 + $0xa0] sm:$0xff]
        %v407 = vld [vmem:[%s1 + $0xa8] sm:$0xff]
        %v408 = vld [vmem:[%s1 + $0xb0] sm:$0xff]
        %v409 = vld [vmem:[%s1 + $0xb8] sm:$0xff]
        %v410 = vld [vmem:[%s1 + $0xc0] sm:$0xff]
        %v411 = vld [vmem:[%s1 + $0xc8] sm:$0xff]
        %v412 = vld [vmem:[%s1 + $0xd0] sm:$0xff]
        %v413 = vld [vmem:[%s1 + $0xd8] sm:$0xff]
        %v414 = vld [vmem:[%s1 + $0xe0] sm:$0xff]
        %v415 = vld [vmem:[%s1 + $0xe8] sm:$0xff]
        %v416 = vld [vmem:[%s1 + $0xf0] sm:$0xff]
        %v417 = vld [vmem:[%s1 + $0xf8] sm:$0xff]
        %v418 = vld [vmem:[%s2] sm:$0x1]
        %v419 = vld [vmem:[%s3] sm:$0xff]
        %v420 = vld [vmem:[%s4] sm:$0xff]
        %v421 = vld [vmem:[%s5] sm:$0xf]
        %v422 = vld [vmem:[%s6] sm:$0xf]
        %v423 = vld [vmem:[%s7] sm:$0xf]
        %v424 = vld [vmem:[%s8] sm:$0xf]
        %v426 = vcombine.high %v385, %v385
        %428 = vmatprep.subr.mxu0 0.0
        %429 = vmatpush1.msra.mxu0 %v401
        %430 = vmatprep.subr.mxu0 0.0
        %431 = vmatpush1.msra.mxu0 %v400
        %432 = vmatprep.subr.mxu0 0.0
        %433 = vmatpush1.msra.mxu0 %v399
        %434 = vmatprep.subr.mxu0 0.0
        %435 = vmatpush1.msra.mxu0 %v398
        %436 = vmatprep.subr.mxu0 0.0
        %437 = vmatpush1.msra.mxu0 %v397
        %438 = vmatprep.subr.mxu0 0.0
        %439 = vmatpush1.msra.mxu0 %v396
        %440 = vmatprep.subr.mxu0 0.0
        %441 = vmatpush1.msra.mxu0 %v395
        %442 = vmatprep.subr.mxu0 0.0
        %443 = vmatpush1.msra.mxu0 %v394
        %444 = vmatprep.subr.mxu0 0.0
        %445 = vmatpush1.msra.mxu0 %v393
        %446 = vmatprep.subr.mxu0 0.0
        %447 = vmatpush1.msra.mxu0 %v392
        %448 = vmatprep.subr.mxu0 0.0
        %449 = vmatpush1.msra.mxu0 %v391
        %450 = vmatprep.subr.mxu0 0.0
        %451 = vmatpush1.msra.mxu0 %v390
        %452 = vmatprep.subr.mxu0 0.0
        %453 = vmatpush1.msra.mxu0 %v389
        %454 = vmatprep.subr.mxu0 0.0
        %455 = vmatpush1.msra.mxu0 %v388
        %456 = vmatprep.subr.mxu0 0.0
        %457 = vmatpush1.msra.mxu0 %v387
        %458 = vmatprep.subr.mxu0 0.0
        %459 = vmatpush1.msra.mxu0 %v386
        %460 = vmatprep.subr.mxu0 0.0
        %461 = vmatpush2.msra.mxu0 %v417
        %462 = vmatprep.subr.mxu0 0.0
        %463 = vmatpush2.msra.mxu0 %v416
        %464 = vmatprep.subr.mxu0 0.0
        %465 = vmatpush2.msra.mxu0 %v415
        %466 = vmatprep.subr.mxu0 0.0
        %467 = vmatpush2.msra.mxu0 %v414
        %468 = vmatprep.subr.mxu0 0.0
        %469 = vmatpush2.msra.mxu0 %v413
        %470 = vmatprep.subr.mxu0 0.0
        %471 = vmatpush2.msra.mxu0 %v412
        %472 = vmatprep.subr.mxu0 0.0
        %473 = vmatpush2.msra.mxu0 %v411
        %474 = vmatprep.subr.mxu0 0.0
        %475 = vmatpush2.msra.mxu0 %v410
        %476 = vmatprep.subr.mxu0 0.0
        %477 = vmatpush2.msra.mxu0 %v409
        %478 = vmatprep.subr.mxu0 0.0
        %479 = vmatpush2.msra.mxu0 %v408
        %480 = vmatprep.subr.mxu0 0.0
        %481 = vmatpush2.msra.mxu0 %v407
        %482 = vmatprep.subr.mxu0 0.0
        %483 = vmatpush2.msra.mxu0 %v406
        %484 = vmatprep.subr.mxu0 0.0
        %485 = vmatpush2.msra.mxu0 %v405
        %486 = vmatprep.subr.mxu0 0.0
        %487 = vmatpush2.msra.mxu0 %v404
        %488 = vmatprep.subr.mxu0 0.0
        %489 = vmatpush2.msra.mxu0 %v403
        %490 = vmatprep.subr.mxu0 0.0
        %491 = vmatpush2.msra.mxu0 %v402
        %492 = vmatprep.mubr.f32.mxu0 %v426
        %493 = vmatmul.mubr.f32.gmra.mxu0 %v385
        %v494 = vpop.f32.mrf.mxu0
        %v495 = vadd.f32 0.0, %v494
        %v496 = vpop.f32.mrf.mxu0
        %497 = vdwg.mxu0
        %v499 = vlaneseq
        %v500 = vshrl.u32 %v499, 7
        %v501 = vsub.s32 0, %v500
        %v502 = vrot.slane %v418, %v501
        %v504 = vmul.f32 %v495, %v502
        %506 = vset.pattern.permute.xlu0 0
        %507 = vperm.xlu0 %506, %v420
        %v508 = vpop.permute.xlu0 %507
        %vm510 = vcmask 31744
        %v512 = vsel %vm510, %v419, 0
        %vm514 = vcmask 1043456
        %v516 = vsel %vm514, %v504, 0
        %518 = vmatprep.subr.mxu0 0.0
        %519 = vmatpush1.msra.mxu0 0.0
        %520 = vmatprep.subr.mxu0 0.0
        %521 = vmatpush1.msra.mxu0 0.0
        %522 = vmatprep.subr.mxu0 0.0
        %523 = vmatpush1.msra.mxu0 0.0
        %524 = vmatprep.subr.mxu0 0.0
        %525 = vmatpush1.msra.mxu0 0.0
        %526 = vmatprep.subr.mxu0 0.0
        %527 = vmatpush1.msra.mxu0 0.0
        %528 = vmatprep.subr.mxu0 0.0
        %529 = vmatpush1.msra.mxu0 0.0
        %530 = vmatprep.subr.mxu0 0.0
        %531 = vmatpush1.msra.mxu0 0.0
        %532 = vmatprep.subr.mxu0 0.0
        %533 = vmatpush1.msra.mxu0 0.0
        %534 = vmatprep.subr.mxu0 0.0
        %535 = vmatpush1.msra.mxu0 0.0
        %536 = vmatprep.subr.mxu0 0.0
        %537 = vmatpush1.msra.mxu0 0.0
        %538 = vmatprep.subr.mxu0 0.0
        %539 = vmatpush1.msra.mxu0 0.0
        %540 = vmatprep.subr.mxu0 0.0
        %541 = vmatpush1.msra.mxu0 0.0
        %542 = vmatprep.subr.mxu0 0.0
        %543 = vmatpush1.msra.mxu0 0.0
        %544 = vmatprep.subr.mxu0 0.0
        %545 = vmatpush1.msra.mxu0 0.0
        %546 = vmatprep.subr.mxu0 0.0
        %547 = vmatpush1.msra.mxu0 0.0
        %548 = vmatprep.subr.mxu0 0.0
        %549 = vmatpush1.msra.mxu0 %v516
        %550 = vmatprep.subr.mxu0 0.0
        %551 = vmatpush2.msra.mxu0 0.0
        %552 = vmatprep.subr.mxu0 0.0
        %553 = vmatpush2.msra.mxu0 0.0
        %554 = vmatprep.subr.mxu0 0.0
        %555 = vmatpush2.msra.mxu0 0.0
        %556 = vmatprep.subr.mxu0 0.0
        %557 = vmatpush2.msra.mxu0 0.0
        %558 = vmatprep.subr.mxu0 0.0
        %559 = vmatpush2.msra.mxu0 0.0
        %560 = vmatprep.subr.mxu0 0.0
        %561 = vmatpush2.msra.mxu0 0.0
        %562 = vmatprep.subr.mxu0 0.0
        %563 = vmatpush2.msra.mxu0 0.0
        %564 = vmatprep.subr.mxu0 0.0
        %565 = vmatpush2.msra.mxu0 0.0
        %566 = vmatprep.subr.mxu0 0.0
        %567 = vmatpush2.msra.mxu0 0.0
        %568 = vmatprep.subr.mxu0 0.0
        %569 = vmatpush2.msra.mxu0 0.0
        %570 = vmatprep.subr.mxu0 0.0
        %571 = vmatpush2.msra.mxu0 0.0
        %572 = vmatprep.subr.mxu0 0.0
        %573 = vmatpush2.msra.mxu0 0.0
        %574 = vmatprep.subr.mxu0 0.0
        %575 = vmatpush2.msra.mxu0 0.0
        %576 = vmatprep.subr.mxu0 0.0
        %577 = vmatpush2.msra.mxu0 0.0
        %578 = vmatprep.subr.mxu0 0.0
        %579 = vmatpush2.msra.mxu0 0.0
        %580 = vmatprep.subr.mxu0 0.0
        %581 = vmatpush2.msra.mxu0 0.0
        %582 = vmatprep.mubr.f32.mxu0 0.0
        %583 = vmatmul.mubr.f32.gmra.mxu0 %v512
        %v584 = vpop.f32.mrf.mxu0
        %v585 = vadd.f32 %v508, %v584
        %v586 = vpop.f32.mrf.mxu0
        %587 = vdwg.mxu0
        %v588 = vadd.f32 %v585, 3.0
        %v589 = vmax.f32 %v588, 0.0
        %v590 = vmin.f32 %v589, 6.0
        %v591 = vmul.f32 %v585, %v590
        %v592 = vmul.f32 %v591, 0.16666667
        %594 = vset.pattern.permute.xlu0 0
        %595 = vperm.xlu0 %594, %v422
        %v596 = vpop.permute.xlu0 %595
        %vm598 = vcmask 64512
        %v600 = vsel %vm598, %v421, 0
        %602 = vmatprep.subr.mxu0 0.0
        %603 = vmatpush1.msra.mxu0 0.0
        %604 = vmatprep.subr.mxu0 0.0
        %605 = vmatpush1.msra.mxu0 0.0
        %606 = vmatprep.subr.mxu0 0.0
        %607 = vmatpush1.msra.mxu0 0.0
        %608 = vmatprep.subr.mxu0 0.0
        %609 = vmatpush1.msra.mxu0 0.0
        %610 = vmatprep.subr.mxu0 0.0
        %611 = vmatpush1.msra.mxu0 0.0
        %612 = vmatprep.subr.mxu0 0.0
        %613 = vmatpush1.msra.mxu0 0.0
        %614 = vmatprep.subr.mxu0 0.0
        %615 = vmatpush1.msra.mxu0 0.0
        %616 = vmatprep.subr.mxu0 0.0
        %617 = vmatpush1.msra.mxu0 0.0
        %618 = vmatprep.subr.mxu0 0.0
        %619 = vmatpush1.msra.mxu0 0.0
        %620 = vmatprep.subr.mxu0 0.0
        %621 = vmatpush1.msra.mxu0 0.0
        %622 = vmatprep.subr.mxu0 0.0
        %623 = vmatpush1.msra.mxu0 0.0
        %624 = vmatprep.subr.mxu0 0.0
        %625 = vmatpush1.msra.mxu0 0.0
        %626 = vmatprep.subr.mxu0 0.0
        %627 = vmatpush1.msra.mxu0 0.0
        %628 = vmatprep.subr.mxu0 0.0
        %629 = vmatpush1.msra.mxu0 0.0
        %630 = vmatprep.subr.mxu0 0.0
        %631 = vmatpush1.msra.mxu0 0.0
        %632 = vmatprep.subr.mxu0 0.0
        %633 = vmatpush1.msra.mxu0 %v592
        %634 = vmatprep.subr.mxu0 0.0
        %635 = vmatpush2.msra.mxu0 0.0
        %636 = vmatprep.subr.mxu0 0.0
        %637 = vmatpush2.msra.mxu0 0.0
        %638 = vmatprep.subr.mxu0 0.0
        %639 = vmatpush2.msra.mxu0 0.0
        %640 = vmatprep.subr.mxu0 0.0
        %641 = vmatpush2.msra.mxu0 0.0
        %642 = vmatprep.subr.mxu0 0.0
        %643 = vmatpush2.msra.mxu0 0.0
        %644 = vmatprep.subr.mxu0 0.0
        %645 = vmatpush2.msra.mxu0 0.0
        %646 = vmatprep.subr.mxu0 0.0
        %647 = vmatpush2.msra.mxu0 0.0
        %648 = vmatprep.subr.mxu0 0.0
        %649 = vmatpush2.msra.mxu0 0.0
        %650 = vmatprep.subr.mxu0 0.0
        %651 = vmatpush2.msra.mxu0 0.0
        %652 = vmatprep.subr.mxu0 0.0
        %653 = vmatpush2.msra.mxu0 0.0
        %654 = vmatprep.subr.mxu0 0.0
        %655 = vmatpush2.msra.mxu0 0.0
        %656 = vmatprep.subr.mxu0 0.0
        %657 = vmatpush2.msra.mxu0 0.0
        %658 = vmatprep.subr.mxu0 0.0
        %659 = vmatpush2.msra.mxu0 0.0
        %660 = vmatprep.subr.mxu0 0.0
        %661 = vmatpush2.msra.mxu0 0.0
        %662 = vmatprep.subr.mxu0 0.0
        %663 = vmatpush2.msra.mxu0 0.0
        %664 = vmatprep.subr.mxu0 0.0
        %665 = vmatpush2.msra.mxu0 0.0
        %666 = vmatprep.mubr.f32.mxu0 0.0
        %667 = vmatmul.mubr.f32.gmra.mxu0 %v600
        %v668 = vpop.f32.mrf.mxu0
        %v669 = vadd.f32 %v596, %v668
        %v670 = vpop.f32.mrf.mxu0
        %671 = vdwg.mxu0
        %673 = vset.pattern.permute.xlu0 0
        %674 = vperm.xlu0 %673, %v424
        %v675 = vpop.permute.xlu0 %674
        %v678 = vsel %vm598, %v423, 0
        %680 = vmatprep.subr.mxu0 0.0
        %681 = vmatpush1.msra.mxu0 0.0
        %682 = vmatprep.subr.mxu0 0.0
        %683 = vmatpush1.msra.mxu0 0.0
        %684 = vmatprep.subr.mxu0 0.0
        %685 = vmatpush1.msra.mxu0 0.0
        %686 = vmatprep.subr.mxu0 0.0
        %687 = vmatpush1.msra.mxu0 0.0
        %688 = vmatprep.subr.mxu0 0.0
        %689 = vmatpush1.msra.mxu0 0.0
        %690 = vmatprep.subr.mxu0 0.0
        %691 = vmatpush1.msra.mxu0 0.0
        %692 = vmatprep.subr.mxu0 0.0
        %693 = vmatpush1.msra.mxu0 0.0
        %694 = vmatprep.subr.mxu0 0.0
        %695 = vmatpush1.msra.mxu0 0.0
        %696 = vmatprep.subr.mxu0 0.0
        %697 = vmatpush1.msra.mxu0 0.0
        %698 = vmatprep.subr.mxu0 0.0
        %699 = vmatpush1.msra.mxu0 0.0
        %700 = vmatprep.subr.mxu0 0.0
        %701 = vmatpush1.msra.mxu0 0.0
        %702 = vmatprep.subr.mxu0 0.0
        %703 = vmatpush1.msra.mxu0 0.0
        %704 = vmatprep.subr.mxu0 0.0
        %705 = vmatpush1.msra.mxu0 0.0
        %706 = vmatprep.subr.mxu0 0.0
        %707 = vmatpush1.msra.mxu0 0.0
        %708 = vmatprep.subr.mxu0 0.0
        %709 = vmatpush1.msra.mxu0 0.0
        %710 = vmatprep.subr.mxu0 0.0
        %711 = vmatpush1.msra.mxu0 %v592
        %712 = vmatprep.subr.mxu0 0.0
        %713 = vmatpush2.msra.mxu0 0.0
        %714 = vmatprep.subr.mxu0 0.0
        %715 = vmatpush2.msra.mxu0 0.0
        %716 = vmatprep.subr.mxu0 0.0
        %717 = vmatpush2.msra.mxu0 0.0
        %718 = vmatprep.subr.mxu0 0.0
        %719 = vmatpush2.msra.mxu0 0.0
        %720 = vmatprep.subr.mxu0 0.0
        %721 = vmatpush2.msra.mxu0 0.0
        %722 = vmatprep.subr.mxu0 0.0
        %723 = vmatpush2.msra.mxu0 0.0
        %724 = vmatprep.subr.mxu0 0.0
        %725 = vmatpush2.msra.mxu0 0.0
        %726 = vmatprep.subr.mxu0 0.0
        %727 = vmatpush2.msra.mxu0 0.0
        %728 = vmatprep.subr.mxu0 0.0
        %729 = vmatpush2.msra.mxu0 0.0
        %730 = vmatprep.subr.mxu0 0.0
        %731 = vmatpush2.msra.mxu0 0.0
        %732 = vmatprep.subr.mxu0 0.0
        %733 = vmatpush2.msra.mxu0 0.0
        %734 = vmatprep.subr.mxu0 0.0
        %735 = vmatpush2.msra.mxu0 0.0
        %736 = vmatprep.subr.mxu0 0.0
        %737 = vmatpush2.msra.mxu0 0.0
        %738 = vmatprep.subr.mxu0 0.0
        %739 = vmatpush2.msra.mxu0 0.0
        %740 = vmatprep.subr.mxu0 0.0
        %741 = vmatpush2.msra.mxu0 0.0
        %742 = vmatprep.subr.mxu0 0.0
        %743 = vmatpush2.msra.mxu0 0.0
        %744 = vmatprep.mubr.f32.mxu0 0.0
        %745 = vmatmul.mubr.f32.gmra.mxu0 %v678
        %v746 = vpop.f32.mrf.mxu0
        %v747 = vadd.f32 %v675, %v746
        %v748 = vpop.f32.mrf.mxu0
        %749 = vdwg.mxu0
        %v750 = vlaneseq
        %v751 = vand.u32 %v750, 127
        %vm752 = vcmp.lt.s32.totalorder %v751, 16
        %v753 = vsel %vm752, %v669, %v747
        %v754 = vxor.u32 %v753, 2147483648
        %v755 = vmul.f32 %v754, 1.442695
        %v756 = vpow.pop %v755
        %v757 = vadd.f32 %v756, 1.0
        %v758 = vrcp.pop %v757
        %v759 = vmul.f32 1.0, %v758
        %v760 = vld [vmem:[%s9] sm:$0xff]
        %v761 = vld [vmem:[%s9 + $0x8] sm:$0xff]
        %v762 = vld [vmem:[%s9 + $0x10] sm:$0xff]
        %v763 = vld [vmem:[%s9 + $0x18] sm:$0xff]
        %v764 = vld [vmem:[%s9 + $0x20] sm:$0xff]
        %v765 = vld [vmem:[%s9 + $0x28] sm:$0xff]
        %v766 = vld [vmem:[%s9 + $0x30] sm:$0xff]
        %v767 = vld [vmem:[%s9 + $0x38] sm:$0xff]
        %v768 = vld [vmem:[%s10] sm:$0xff]
        %v769 = vld [vmem:[%s10 + $0x8] sm:$0xff]
        %v770 = vld [vmem:[%s10 + $0x10] sm:$0xff]
        %v771 = vld [vmem:[%s10 + $0x18] sm:$0xff]
        %v772 = vld [vmem:[%s10 + $0x20] sm:$0xff]
        %v773 = vld [vmem:[%s10 + $0x28] sm:$0xff]
        %v774 = vld [vmem:[%s10 + $0x30] sm:$0xff]
        %v775 = vld [vmem:[%s10 + $0x38] sm:$0xff]
        %vm776 = vcmask 261120
        %v778 = vsel %vm776, %v759, 0
        %780 = vmatprep.subr.mxu0 0.0
        %781 = vmatpush1.msra.mxu0 0.0
        %782 = vmatprep.subr.mxu0 0.0
        %783 = vmatpush1.msra.mxu0 0.0
        %784 = vmatprep.subr.mxu0 0.0
        %785 = vmatpush1.msra.mxu0 0.0
        %786 = vmatprep.subr.mxu0 0.0
        %787 = vmatpush1.msra.mxu0 0.0
        %788 = vmatprep.subr.mxu0 0.0
        %789 = vmatpush1.msra.mxu0 0.0
        %790 = vmatprep.subr.mxu0 0.0
        %791 = vmatpush1.msra.mxu0 0.0
        %792 = vmatprep.subr.mxu0 0.0
        %793 = vmatpush1.msra.mxu0 0.0
        %794 = vmatprep.subr.mxu0 0.0
        %795 = vmatpush1.msra.mxu0 0.0
        %796 = vmatprep.subr.mxu0 0.0
        %797 = vmatpush1.msra.mxu0 0.0
        %798 = vmatprep.subr.mxu0 0.0
        %799 = vmatpush1.msra.mxu0 0.0
        %800 = vmatprep.subr.mxu0 0.0
        %801 = vmatpush1.msra.mxu0 0.0
        %802 = vmatprep.subr.mxu0 0.0
        %803 = vmatpush1.msra.mxu0 0.0
        %804 = vmatprep.subr.mxu0 %v767
        %805 = vmatpush1.msra.mxu0 %v766
        %806 = vmatprep.subr.mxu0 %v765
        %807 = vmatpush1.msra.mxu0 %v764
        %808 = vmatprep.subr.mxu0 %v763
        %809 = vmatpush1.msra.mxu0 %v762
        %810 = vmatprep.subr.mxu0 %v761
        %811 = vmatpush1.msra.mxu0 %v760
        %812 = vmatprep.subr.mxu0 0.0
        %813 = vmatpush2.msra.mxu0 0.0
        %814 = vmatprep.subr.mxu0 0.0
        %815 = vmatpush2.msra.mxu0 0.0
        %816 = vmatprep.subr.mxu0 0.0
        %817 = vmatpush2.msra.mxu0 0.0
        %818 = vmatprep.subr.mxu0 0.0
        %819 = vmatpush2.msra.mxu0 0.0
        %820 = vmatprep.subr.mxu0 0.0
        %821 = vmatpush2.msra.mxu0 0.0
        %822 = vmatprep.subr.mxu0 0.0
        %823 = vmatpush2.msra.mxu0 0.0
        %824 = vmatprep.subr.mxu0 0.0
        %825 = vmatpush2.msra.mxu0 0.0
        %826 = vmatprep.subr.mxu0 0.0
        %827 = vmatpush2.msra.mxu0 0.0
        %828 = vmatprep.subr.mxu0 0.0
        %829 = vmatpush2.msra.mxu0 0.0
        %830 = vmatprep.subr.mxu0 0.0
        %831 = vmatpush2.msra.mxu0 0.0
        %832 = vmatprep.subr.mxu0 0.0
        %833 = vmatpush2.msra.mxu0 0.0
        %834 = vmatprep.subr.mxu0 0.0
        %835 = vmatpush2.msra.mxu0 0.0
        %836 = vmatprep.subr.mxu0 0.0
        %837 = vmatpush2.msra.mxu0 0.0
        %838 = vmatprep.subr.mxu0 0.0
        %839 = vmatpush2.msra.mxu0 0.0
        %840 = vmatprep.subr.mxu0 0.0
        %841 = vmatpush2.msra.mxu0 0.0
        %842 = vmatprep.subr.mxu0 0.0
        %843 = vmatpush2.msra.mxu0 0.0
        %844 = vmatprep.mubr.f32.mxu0 0.0
        %845 = vmatmul.mubr.f32.gmra.mxu0 %v778
        %v846 = vpop.f32.mrf.mxu0
        %v847 = vadd.f32 0.0, %v846
        %v848 = vpop.f32.mrf.mxu0
        %v849 = vadd.f32 0.0, %v848
        %850 = vdwg.mxu0
        %851 = vmatprep.subr.mxu0 0.0
        %852 = vmatpush1.msra.mxu0 0.0
        %853 = vmatprep.subr.mxu0 0.0
        %854 = vmatpush1.msra.mxu0 0.0
        %855 = vmatprep.subr.mxu0 0.0
        %856 = vmatpush1.msra.mxu0 0.0
        %857 = vmatprep.subr.mxu0 0.0
        %858 = vmatpush1.msra.mxu0 0.0
        %859 = vmatprep.subr.mxu0 0.0
        %860 = vmatpush1.msra.mxu0 0.0
        %861 = vmatprep.subr.mxu0 0.0
        %862 = vmatpush1.msra.mxu0 0.0
        %863 = vmatprep.subr.mxu0 0.0
        %864 = vmatpush1.msra.mxu0 0.0
        %865 = vmatprep.subr.mxu0 0.0
        %866 = vmatpush1.msra.mxu0 0.0
        %867 = vmatprep.subr.mxu0 0.0
        %868 = vmatpush1.msra.mxu0 0.0
        %869 = vmatprep.subr.mxu0 0.0
        %870 = vmatpush1.msra.mxu0 0.0
        %871 = vmatprep.subr.mxu0 0.0
        %872 = vmatpush1.msra.mxu0 0.0
        %873 = vmatprep.subr.mxu0 0.0
        %874 = vmatpush1.msra.mxu0 0.0
        %875 = vmatprep.subr.mxu0 %v775
        %876 = vmatpush1.msra.mxu0 %v774
        %877 = vmatprep.subr.mxu0 %v773
        %878 = vmatpush1.msra.mxu0 %v772
        %879 = vmatprep.subr.mxu0 %v771
        %880 = vmatpush1.msra.mxu0 %v770
        %881 = vmatprep.subr.mxu0 %v769
        %882 = vmatpush1.msra.mxu0 %v768
        %883 = vmatprep.subr.mxu0 0.0
        %884 = vmatpush2.msra.mxu0 0.0
        %885 = vmatprep.subr.mxu0 0.0
        %886 = vmatpush2.msra.mxu0 0.0
        %887 = vmatprep.subr.mxu0 0.0
        %888 = vmatpush2.msra.mxu0 0.0
        %889 = vmatprep.subr.mxu0 0.0
        %890 = vmatpush2.msra.mxu0 0.0
        %891 = vmatprep.subr.mxu0 0.0
        %892 = vmatpush2.msra.mxu0 0.0
        %893 = vmatprep.subr.mxu0 0.0
        %894 = vmatpush2.msra.mxu0 0.0
        %895 = vmatprep.subr.mxu0 0.0
        %896 = vmatpush2.msra.mxu0 0.0
        %897 = vmatprep.subr.mxu0 0.0
        %898 = vmatpush2.msra.mxu0 0.0
        %899 = vmatprep.subr.mxu0 0.0
        %900 = vmatpush2.msra.mxu0 0.0
        %901 = vmatprep.subr.mxu0 0.0
        %902 = vmatpush2.msra.mxu0 0.0
        %903 = vmatprep.subr.mxu0 0.0
        %904 = vmatpush2.msra.mxu0 0.0
        %905 = vmatprep.subr.mxu0 0.0
        %906 = vmatpush2.msra.mxu0 0.0
        %907 = vmatprep.subr.mxu0 0.0
        %908 = vmatpush2.msra.mxu0 0.0
        %909 = vmatprep.subr.mxu0 0.0
        %910 = vmatpush2.msra.mxu0 0.0
        %911 = vmatprep.subr.mxu0 0.0
        %912 = vmatpush2.msra.mxu0 0.0
        %913 = vmatprep.subr.mxu0 0.0
        %914 = vmatpush2.msra.mxu0 0.0
        %915 = vmatprep.mubr.f32.mxu0 0.0
        %916 = vmatmul.mubr.f32.gmra.mxu0 %v778
        %v917 = vpop.f32.mrf.mxu0
        %v918 = vadd.f32 0.0, %v917
        %v919 = vpop.f32.mrf.mxu0
        %v920 = vadd.f32 0.0, %v919
        %921 = vdwg.mxu0
        %v922 = vmul.f32 %v847, %v918
        %v923 = vmul.f32 %v849, %v920
        %v926 = vcombine.low %v922, %v923
        %v928 = vmul.f32 %v385, %v926
        %929 = vst [vmem:[%s379] sm:$0xff] %v928
        %s930 = sand.u32 %s269, 1
        %s931 = scalar_lea.sflag [#allocation3], %s930
        %s932 = sand.u32 %s269, 1
        %s933 = smul.addr %s932, 8
        %s934 = scalar_lea.vmem [#allocation2], %s933
        // Predicated region
        $region65: #{tpu_custom_call.1} parent=63 // pred_check
          %p935 = pneg %p279
        $region66: #{tpu_custom_call.1} parent=63 // pred_check_branch
          %937 = sbr.rel (%p935) target = $region68
        $region67: #{tpu_custom_call.1} parent=63 // pred_region
          %s939 = ssub.s32 128, 128
          %940 = vsyncadd %s931, %s939
          %s941 = smul.addr %s25, 2
          %s942 = smul.addr %s941, 64
          %s943 = scalar_lea.hbm %s11, %s942
          %s945 = sshll.u32 %s934, 4
          %s946 = int_to_ptr.vmem [resolvable:$true] %s945
          %948 = dma.vmem_to_hbm [thread:$0]  %s946, 128, %s943, %s931
        $region68: #{tpu_custom_call.1} parent=63 // pred_fallthru
          _
      $region64: #{tpu_custom_call.1} parent=5 // pred_fallthru
        _
      %p949 = scmp.le.s32.totalorder 2, %s20
      // Predicated region
      $region69: #{tpu_custom_call.1} parent=5 // pred_check
        %p950 = pneg %p949
      $region70: #{tpu_custom_call.1} parent=5 // pred_check_branch
        %952 = sbr.rel (%p950) target = $region72
      $region71: #{tpu_custom_call.1} parent=5 // pred_region
        %s953 = ssub.s32 %s20, 2
        // Predicated region
        $region73: #{tpu_custom_call.1} parent=71 // pred_check
          %p954 = pneg %p285
        $region74: #{tpu_custom_call.1} parent=71 // pred_check_branch
          %956 = sbr.rel (%p954) target = $region76
        $region75: #{tpu_custom_call.1} parent=71 // pred_region
          %s957 = sand.u32 %s270, 1
          %s958 = scalar_lea.sflag [#allocation3], %s957
          %s959 = sand.u32 %s270, 1
          %s960 = smul.addr %s959, 8
          %s961 = scalar_lea.vmem [#allocation2], %s960
          %962 = dma.done %s958, 128
        $region76: #{tpu_custom_call.1} parent=71 // pred_fallthru
          _
      $region72: #{tpu_custom_call.1} parent=5 // pred_fallthru
        _
    $region6: #{tpu_custom_call.1} parent=1 // loop_footer
      %s24 = sadd.s32 1, %s20
    $region7: #{tpu_custom_call.1} parent=1 // loop_footer_branch
      %19 = sbr.rel target = $region3
    $region8: #{tpu_custom_call.1} parent=1 // loop_exit
      _
    %963 = vsyncpa [#allocation3], 1
    %s964 = scalar_lea.sflag [#allocation3], 1
    %965 = vsyncpa %s964, 1

</llo_original>
